<compile_context>
chip_gen: v7x
topology: tpu7x:2x2x1
jax: 0.10.0
libtpu: 0.0.40
codegen_flags: <defaults>
</compile_context>

<pallas_src>
import functools

import jax
import jax.numpy as jnp
from jax.experimental import pallas as pl
from jax.experimental.pallas import tpu as pltpu


_LANE = 128
_SMALL_IO_MAX = 8   # use the VPU path when n_feature and n_output are both <= this


def _round_up(n, m):
    return (n + m - 1) // m * m


def _pad_to(a, shape):
    return jnp.pad(a, [(0, t - s) for s, t in zip(a.shape, shape)])


def _batch_tiling(n, tile_n, sublane):
    """Single grid step (pad batch only to the sublane) if it fits, else tile.

    For v7x, lower tile_n once per-tile compute clearly exceeds the ~0.35us
    per-grid-step overhead so that >=2 "parallel" steps can engage both TCs.
    """
    if n <= tile_n:
        n_pad = _round_up(n, sublane)
        return n_pad, n_pad
    n_pad = _round_up(n, tile_n)
    return n_pad, tile_n


# ----------------------------------------------------------------------------
# Kernels
# ----------------------------------------------------------------------------
def _mlp_small_io_kernel(x_ref, w1_ref, b1_ref, w2_ref, b2_ref, o_ref):
    """VPU/XLU path for tiny feature/output dims (no MXU, no 1->128 padding).

    x_ref : (bt, F)  f32    w1_ref: (F, Hp) f32    b1_ref: (1, Hp) f32
    w2_ref: (O, Hp)  f32    b2_ref: (1, O)  f32    o_ref : (bt, O) f32
    """
    n_feature = x_ref.shape[1]
    n_output = o_ref.shape[1]
    x = x_ref[...]
    w1 = w1_ref[...]

    # hidden = relu(x @ W1^T + b1) as F lane-broadcast multiply-adds (VPU).
    h = b1_ref[...]                                   # (1, Hp), broadcasts up
    for f in range(n_feature):                        # F is tiny & static
        h = h + x[:, f:f + 1] * w1[f:f + 1, :]        # (bt,1)*(1,Hp)
    h = jnp.maximum(h, 0.0)                           # (bt, Hp)

    # predict = h @ W2^T + b2 as O per-row lane reductions (XLU).
    w2 = w2_ref[...]
    b2 = b2_ref[...]
    cols = [jnp.sum(h * w2[o:o + 1, :], axis=-1, keepdims=True) + b2[0:1, o:o + 1]
            for o in range(n_output)]                 # O is tiny & static
    out = cols[0] if n_output == 1 else jnp.concatenate(cols, axis=-1)
    o_ref[...] = out.astype(o_ref.dtype)


def _mlp_mxu_kernel(x_ref, w1_ref, b1_ref, w2_ref, b2_ref, o_ref):
    """General path: bf16 operands on the MXU, f32 accumulation / bias / relu."""
    h = jnp.dot(x_ref[...], w1_ref[...], preferred_element_type=jnp.float32)
    h = jnp.maximum(h + b1_ref[...], 0.0)
    out = jnp.dot(h.astype(w2_ref.dtype), w2_ref[...],
                  preferred_element_type=jnp.float32)
    o_ref[...] = (out + b2_ref[...]).astype(o_ref.dtype)


# ----------------------------------------------------------------------------
# One-time layout plumbing (hoisted out of the forward path)
# ----------------------------------------------------------------------------
def prepare_params(w1, b1, w2, b2, *, compute_dtype=jnp.bfloat16):
    """Transpose / pad / cast the PyTorch-convention weights exactly once.

    In: weight (out, in), bias (out,).  Returns padded device arrays + metadata.
    """
    n_hidden, n_feature = w1.shape
    n_output, n_hidden2 = w2.shape
    assert n_hidden2 == n_hidden
    h_pad = _round_up(n_hidden, _LANE)

    if n_feature <= _SMALL_IO_MAX and n_output <= _SMALL_IO_MAX:
        # Degenerate-dims VPU path: hidden lives on the lane axis; feature and
        # output keep their real (tiny) widths; everything stays f32.
        return dict(
            path="vpu",
            w1=_pad_to(w1.T.astype(jnp.float32), (n_feature, h_pad)),   # (F, Hp)
            b1=_pad_to(b1.astype(jnp.float32)[None, :], (1, h_pad)),    # (1, Hp)
            w2=_pad_to(w2.astype(jnp.float32), (n_output, h_pad)),      # (O, Hp)
            b2=b2.astype(jnp.float32)[None, :],                         # (1, O)
            n_output=n_output,
        )

    # General MXU path: weights pre-transposed to (in, out), lane-padded, and
    # cast to bf16; biases stay f32 (added to the f32 accumulator in-kernel).
    f_pad = _round_up(n_feature, _LANE)
    o_pad = _round_up(n_output, _LANE)
    return dict(
        path="mxu",
        w1=_pad_to(w1.T.astype(compute_dtype), (f_pad, h_pad)),          # (Fp, Hp)
        b1=_pad_to(b1.astype(jnp.float32)[None, :], (1, h_pad)),         # (1, Hp)
        w2=_pad_to(w2.T.astype(compute_dtype), (h_pad, o_pad)),          # (Hp, Op)
        b2=_pad_to(b2.astype(jnp.float32)[None, :], (1, o_pad)),         # (1, Op)
        n_output=n_output,
    )


# ----------------------------------------------------------------------------
# Forward paths
# ----------------------------------------------------------------------------
@functools.partial(jax.jit, static_argnames=("tile_n",))
def _forward_vpu(x, w1_t, b1_p, w2_p, b2_p, *, tile_n=512):
    n, n_feature = x.shape
    h_pad = w1_t.shape[1]
    n_out = w2_p.shape[0]
    n_pad, bt = _batch_tiling(n, tile_n, sublane=8)          # f32 sublane = 8
    x_p = _pad_to(x.astype(jnp.float32), (n_pad, n_feature))

    out_p = pl.pallas_call(
        _mlp_small_io_kernel,
        out_shape=jax.ShapeDtypeStruct((n_pad, n_out), jnp.float32),
        grid=(n_pad // bt,),
        in_specs=[
            pl.BlockSpec((bt, n_feature), lambda i: (i, 0)),     # x tile (real width)
            pl.BlockSpec((n_feature, h_pad), lambda i: (0, 0)),  # W1^T (tiny, resident)
            pl.BlockSpec((1, h_pad), lambda i: (0, 0)),          # b1
            pl.BlockSpec((n_out, h_pad), lambda i: (0, 0)),      # W2 (PyTorch (out,in))
            pl.BlockSpec((1, n_out), lambda i: (0, 0)),          # b2
        ],
        out_specs=pl.BlockSpec((bt, n_out), lambda i: (i, 0)),
        compiler_params=pltpu.CompilerParams(
            dimension_semantics=("parallel",),    # batch tiles split across TCs on v7x
        ),
    )(x_p, w1_t, b1_p, w2_p, b2_p)
    return out_p[:n, :]


@functools.partial(jax.jit, static_argnames=("n_output", "tile_n"))
def _forward_mxu(x, w1_t, b1_p, w2_t, b2_p, *, n_output, tile_n=256):
    n, _ = x.shape
    f_pad, h_pad = w1_t.shape
    o_pad = w2_t.shape[1]
    cdt = w1_t.dtype
    cbytes = jnp.dtype(cdt).itemsize
    sublane = 16 if cdt == jnp.bfloat16 else 8
    n_pad, bt = _batch_tiling(n, tile_n, sublane=sublane)
    x_p = _pad_to(x.astype(cdt), (n_pad, f_pad))

    # Explicit VMEM budget: single-buffered resident weights + double-buffered
    # x/out tiles + f32 intermediates, with headroom; capped at v7x's 64 MiB.
    footprint = ((f_pad * h_pad + h_pad * o_pad) * cbytes
                 + (h_pad + o_pad) * 4
                 + 2 * bt * f_pad * cbytes + 2 * bt * o_pad * 4
                 + bt * (h_pad + o_pad) * 4)
    vmem_limit = int(min(2 * footprint + (16 << 20), 64 << 20))

    # TODO(synk): for hidden sizes whose resident W1^T/W2^T exceed this budget
    # (threshold is 2x lower on v7x's 64 MiB than v6e's 128 MiB), add a hidden
    # ("arbitrary") grid axis with an f32 VMEM accumulator + pl.when
    # init/finalize instead of keeping both weight matrices resident per step.
    out_p = pl.pallas_call(
        _mlp_mxu_kernel,
        out_shape=jax.ShapeDtypeStruct((n_pad, o_pad), jnp.float32),
        grid=(n_pad // bt,),
        in_specs=[
            pl.BlockSpec((bt, f_pad), lambda i: (i, 0)),               # x tile (streamed)
            pl.BlockSpec((f_pad, h_pad), lambda i: (0, 0),
                         pipeline_mode=pl.Buffered(buffer_count=1)),   # W1^T resident, single-buffered
            pl.BlockSpec((1, h_pad), lambda i: (0, 0),
                         pipeline_mode=pl.Buffered(buffer_count=1)),   # b1
            pl.BlockSpec((h_pad, o_pad), lambda i: (0, 0),
                         pipeline_mode=pl.Buffered(buffer_count=1)),   # W2^T resident, single-buffered
            pl.BlockSpec((1, o_pad), lambda i: (0, 0),
                         pipeline_mode=pl.Buffered(buffer_count=1)),   # b2
        ],
        out_specs=pl.BlockSpec((bt, o_pad), lambda i: (i, 0)),
        compiler_params=pltpu.CompilerParams(
            dimension_semantics=("parallel",),    # batch tiles split across TCs on v7x
            vmem_limit_bytes=vmem_limit,
        ),
    )(x_p, w1_t, b1_p, w2_t, b2_p)
    return out_p[:n, :n_output]


def net_forward(x, params):
    """y = relu(x @ W1^T + b1) @ W2^T + b2 given prepare_params() output."""
    if params["path"] == "vpu":
        return _forward_vpu(x, params["w1"], params["b1"], params["w2"], params["b2"])
    return _forward_mxu(x, params["w1"], params["b1"], params["w2"], params["b2"],
                        n_output=params["n_output"])


# ----------------------------------------------------------------------------
# Deterministic init / reference
# ----------------------------------------------------------------------------
def init_params(key, n_feature, n_hidden, n_output):
    # PyTorch Linear shape conventions: weight = (out, in), bias = (out,).
    k1, k2, k3, k4 = jax.random.split(key, 4)
    w1 = jax.random.uniform(k1, (n_hidden, n_feature), jnp.float32, -1.0, 1.0)
    b1 = jax.random.uniform(k2, (n_hidden,), jnp.float32, -1.0, 1.0)
    w2 = jax.random.uniform(k3, (n_output, n_hidden), jnp.float32, -1.0, 1.0)
    b2 = jax.random.uniform(k4, (n_output,), jnp.float32, -1.0, 1.0)
    return w1, b1, w2, b2


def _reference(x, w1, b1, w2, b2):
    hi = jax.lax.Precision.HIGHEST
    h = jnp.maximum(jnp.dot(x, w1.T, precision=hi) + b1[None, :], 0.0)
    return jnp.dot(h, w2.T, precision=hi) + b2[None, :]


if __name__ == "__main__":
    # --- exact config implied by the reference script: 1 -> 10 -> 1, batch=100
    n_feature, n_hidden, n_output = 1, 10, 1
    batch = 100
    # x = torch.unsqueeze(torch.linspace(-1, 1, 100), dim=1)
    x = jnp.linspace(-1.0, 1.0, batch, dtype=jnp.float32)[:, None]

    key = jax.random.PRNGKey(0)
    w1, b1, w2, b2 = init_params(key, n_feature, n_hidden, n_output)
    params = prepare_params(w1, b1, w2, b2)      # one-time plumbing (hoisted)

    out = jax.block_until_ready(net_forward(x, params))
    ref = _reference(x, w1, b1, w2, b2)
    assert out.shape == (batch, n_output)
    assert jnp.allclose(out, ref, atol=1e-5, rtol=1e-5)

    # --- also exercise the general bf16 MXU path at a modest, non-degenerate
    #     size (2 batch tiles -> multi-step "parallel" grid).
    nf2, nh2, no2, batch2 = 128, 256, 128, 384
    kp, kx = jax.random.split(jax.random.PRNGKey(0))
    w1b, b1b, w2b, b2b = init_params(kp, nf2, nh2, no2)
    xb = jax.random.normal(kx, (batch2, nf2), jnp.float32)
    params2 = prepare_params(w1b, b1b, w2b, b2b)

    out2 = jax.block_until_ready(net_forward(xb, params2))
    ref2 = _reference(xb, w1b, b1b, w2b, b2b)
    assert out2.shape == (batch2, no2)
    # bf16 operands with f32 accumulation -> loosened tolerance.
    assert jnp.allclose(out2, ref2, atol=1.0, rtol=2e-2)

    print("KERNEL_OK")
</pallas_src>

<mosaic_0001>
module attributes {stable_mosaic.version = 11 : i64} {
  func.func @_mlp_small_io_kernel(%arg0: i32, %arg1: memref<104x1xf32, #tpu.memory_space<vmem>>, %arg2: memref<1x128xf32, #tpu.memory_space<vmem>>, %arg3: memref<1x128xf32, #tpu.memory_space<vmem>>, %arg4: memref<1x128xf32, #tpu.memory_space<vmem>>, %arg5: memref<1x1xf32, #tpu.memory_space<vmem>>, %arg6: memref<104x1xf32, #tpu.memory_space<vmem>>) attributes {dimension_semantics = [#tpu.dimension_semantics<parallel>], iteration_bounds = array<i64: 1>, scalar_prefetch = 0 : i64, scratch_operands = 0 : i64, tpu.core_type = #tpu.core_type<tc>, window_params = [{transform_indices = @transform_0, window_bounds = array<i64: 104, 1>}, {pipeline_mode = #tpu.pipeline_mode<synchronous>, transform_indices = @transform_1, window_bounds = array<i64: 1, 128>}, {pipeline_mode = #tpu.pipeline_mode<synchronous>, transform_indices = @transform_2, window_bounds = array<i64: 1, 128>}, {pipeline_mode = #tpu.pipeline_mode<synchronous>, transform_indices = @transform_3, window_bounds = array<i64: 1, 128>}, {pipeline_mode = #tpu.pipeline_mode<synchronous>, transform_indices = @transform_4, window_bounds = array<i64: 1, 1>}, {transform_indices = @transform_5, window_bounds = array<i64: 104, 1>}]} {
    %c0 = arith.constant 0 : index
    %c0_0 = arith.constant 0 : index
    %0 = vector.load %arg1[%c0, %c0_0] : memref<104x1xf32, #tpu.memory_space<vmem>>, vector<104x1xf32>
    %c0_1 = arith.constant 0 : index
    %c0_2 = arith.constant 0 : index
    %1 = vector.load %arg2[%c0_1, %c0_2] : memref<1x128xf32, #tpu.memory_space<vmem>>, vector<1x128xf32>
    %c0_3 = arith.constant 0 : index
    %c0_4 = arith.constant 0 : index
    %2 = vector.load %arg3[%c0_3, %c0_4] : memref<1x128xf32, #tpu.memory_space<vmem>>, vector<1x128xf32>
    %3 = vector.broadcast %0 : vector<104x1xf32> to vector<104x128xf32>
    %4 = vector.broadcast %1 : vector<1x128xf32> to vector<104x128xf32>
    %5 = arith.mulf %3, %4 : vector<104x128xf32>
    %6 = vector.broadcast %2 : vector<1x128xf32> to vector<104x128xf32>
    %7 = arith.addf %6, %5 : vector<104x128xf32>
    %cst = arith.constant 0.000000e+00 : f32
    %8 = vector.broadcast %cst : f32 to vector<104x128xf32>
    %9 = arith.maximumf %7, %8 : vector<104x128xf32>
    %c0_5 = arith.constant 0 : index
    %c0_6 = arith.constant 0 : index
    %10 = vector.load %arg4[%c0_5, %c0_6] : memref<1x128xf32, #tpu.memory_space<vmem>>, vector<1x128xf32>
    %c0_7 = arith.constant 0 : index
    %c0_8 = arith.constant 0 : index
    %11 = vector.load %arg5[%c0_7, %c0_8] : memref<1x1xf32, #tpu.memory_space<vmem>>, vector<1x1xf32>
    %12 = vector.broadcast %10 : vector<1x128xf32> to vector<104x128xf32>
    %13 = arith.mulf %9, %12 : vector<104x128xf32>
    %cst_9 = arith.constant dense<0.000000e+00> : vector<104xf32>
    %14 = vector.multi_reduction <add>, %13, %cst_9 [1] : vector<104x128xf32> to vector<104xf32>
    %15 = vector.shape_cast %14 : vector<104xf32> to vector<104x1xf32>
    %16 = vector.broadcast %11 : vector<1x1xf32> to vector<104x1xf32>
    %17 = arith.addf %15, %16 : vector<104x1xf32>
    %c0_10 = arith.constant 0 : index
    %c0_11 = arith.constant 0 : index
    %18 = vector.load %arg6[%c0_10, %c0_11] : memref<104x1xf32, #tpu.memory_space<vmem>>, vector<104x1xf32>
    tpu.vector_store %arg6[%c0_10, %c0_11], %17 {strides = array<i32>} : memref<104x1xf32, #tpu.memory_space<vmem>>, vector<104x1xf32>,
    return
  }
  func.func @transform_0(%arg0: i32) -> (i32, i32) {
    %c0_i32 = arith.constant 0 : i32
    %c0_i32_0 = arith.constant 0 : i32
    return %arg0, %c0_i32 : i32, i32
  }
  func.func @transform_1(%arg0: i32) -> (i32, i32) {
    %c0_i32 = arith.constant 0 : i32
    %c0_i32_0 = arith.constant 0 : i32
    %c0_i32_1 = arith.constant 0 : i32
    return %c0_i32, %c0_i32_0 : i32, i32
  }
  func.func @transform_2(%arg0: i32) -> (i32, i32) {
    %c0_i32 = arith.constant 0 : i32
    %c0_i32_0 = arith.constant 0 : i32
    %c0_i32_1 = arith.constant 0 : i32
    return %c0_i32, %c0_i32_0 : i32, i32
  }
  func.func @transform_3(%arg0: i32) -> (i32, i32) {
    %c0_i32 = arith.constant 0 : i32
    %c0_i32_0 = arith.constant 0 : i32
    %c0_i32_1 = arith.constant 0 : i32
    return %c0_i32, %c0_i32_0 : i32, i32
  }
  func.func @transform_4(%arg0: i32) -> (i32, i32) {
    %c0_i32 = arith.constant 0 : i32
    %c0_i32_0 = arith.constant 0 : i32
    %c0_i32_1 = arith.constant 0 : i32
    return %c0_i32, %c0_i32_0 : i32, i32
  }
  func.func @transform_5(%arg0: i32) -> (i32, i32) {
    %c0_i32 = arith.constant 0 : i32
    %c0_i32_0 = arith.constant 0 : i32
    return %arg0, %c0_i32 : i32, i32
  }
}

</mosaic_0001>

<llo_original>
// kernel: _forward_vpu.1
$region0: #{_forward_vpu.1}
  #allocation0 [shape = 'u32[]', space=smem, size = 0x4, offset = 0x4, fixed_abs, tag = 'smem constant byte address 0x4 - core index']
  #allocation1 [shape = 'u32[144,128]{1,0:T(1,128)}', space=vmem, size = 0x12000, scoped, tag = 'internal scratch']
  #allocation2 [shape = 'f32[1,1]{1,0:T(1,128)S(1)}', space=vmem, size = 0x200, scoped, tag = 'scoped memory for _forward_vpu.1']
  %s0 = inlined_call_operand.vmem [shape: f32[104,1], index: 0, kind: input, shape index: {}]
  %s1 = inlined_call_operand.vmem [shape: f32[1,128], index: 1, kind: input, shape index: {}]
  %s2 = inlined_call_operand.vmem [shape: f32[1,128], index: 2, kind: input, shape index: {}]
  %s3 = inlined_call_operand.vmem [shape: f32[1,128], index: 3, kind: input, shape index: {}]
  %s4 = inlined_call_operand.<no memory space> [shape: f32[1,1], index: 4, kind: input, shape index: {}]
  %s5 = inlined_call_operand.vmem [shape: f32[104,1], index: 5, kind: output, shape index: {}]
  %s6 = sld [smem:[#allocation0]]
  $region30: #{_forward_vpu.1} parent=0
    _
  %s8 = ssub.s32 1, %s6
  %s9 = scalar_select 0, %s8, %s6
  %v10 = vstv %s4
  %11 = vst [vmem:[#allocation2] sm:$0x1] %v10
  // Predicated region
  $region2: #{_forward_vpu.1} parent=0 // pred_check
    _
  $region3: #{_forward_vpu.1} parent=0 // pred_check_branch
    %13 = sbr.rel (0) target = $region5
  $region4: #{_forward_vpu.1} parent=0 // pred_region
    _
  $region5: #{_forward_vpu.1} parent=0 // pred_fallthru
    _
  // Predicated region
  $region6: #{_forward_vpu.1} parent=0 // pred_check
    _
  $region7: #{_forward_vpu.1} parent=0 // pred_check_branch
    %15 = sbr.rel (0) target = $region9
  $region8: #{_forward_vpu.1} parent=0 // pred_region
    _
  $region9: #{_forward_vpu.1} parent=0 // pred_fallthru
    _
  // Predicated region
  $region10: #{_forward_vpu.1} parent=0 // pred_check
    _
  $region11: #{_forward_vpu.1} parent=0 // pred_check_branch
    %17 = sbr.rel (0) target = $region13
  $region12: #{_forward_vpu.1} parent=0 // pred_region
    _
  $region13: #{_forward_vpu.1} parent=0 // pred_fallthru
    _
  // Predicated region
  $region14: #{_forward_vpu.1} parent=0 // pred_check
    _
  $region15: #{_forward_vpu.1} parent=0 // pred_check_branch
    %19 = sbr.rel (0) target = $region17
  $region16: #{_forward_vpu.1} parent=0 // pred_region
    _
  $region17: #{_forward_vpu.1} parent=0 // pred_fallthru
    _
  // Predicated region
  $region18: #{_forward_vpu.1} parent=0 // pred_check
    _
  $region19: #{_forward_vpu.1} parent=0 // pred_check_branch
    %21 = sbr.rel (0) target = $region21
  $region20: #{_forward_vpu.1} parent=0 // pred_region
    _
  $region21: #{_forward_vpu.1} parent=0 // pred_fallthru
    _
  %v22 = vld [vmem:[%s0] sm:$0xff]
  %v23 = vld [vmem:[%s0 + $0x8] sm:$0xff]
  %v24 = vld [vmem:[%s0 + $0x10] sm:$0xff]
  %v25 = vld [vmem:[%s0 + $0x18] sm:$0xff]
  %v26 = vld [vmem:[%s0 + $0x20] sm:$0xff]
  %v27 = vld [vmem:[%s0 + $0x28] sm:$0xff]
  %v28 = vld [vmem:[%s0 + $0x30] sm:$0xff]
  %v29 = vld [vmem:[%s0 + $0x38] sm:$0xff]
  %v30 = vld [vmem:[%s0 + $0x40] sm:$0xff]
  %v31 = vld [vmem:[%s0 + $0x48] sm:$0xff]
  %v32 = vld [vmem:[%s0 + $0x50] sm:$0xff]
  %v33 = vld [vmem:[%s0 + $0x58] sm:$0xff]
  %v34 = vld [vmem:[%s0 + $0x60] sm:$0xff]
  %v35 = vld [vmem:[%s1] sm:$0x1]
  %v36 = vld [vmem:[%s2] sm:$0x1]
  %38 = vset.pattern.permute.xlu0 0
  %39 = vperm.xlu0 %38, %v22
  %v40 = vpop.permute.xlu0 %39
  %43 = vset.pattern.permute.xlu0 0
  %44 = vperm.xlu0 %43, %v23
  %v45 = vpop.permute.xlu0 %44
  %48 = vset.pattern.permute.xlu0 0
  %49 = vperm.xlu0 %48, %v24
  %v50 = vpop.permute.xlu0 %49
  %53 = vset.pattern.permute.xlu0 0
  %54 = vperm.xlu0 %53, %v25
  %v55 = vpop.permute.xlu0 %54
  %58 = vset.pattern.permute.xlu0 0
  %59 = vperm.xlu0 %58, %v26
  %v60 = vpop.permute.xlu0 %59
  %63 = vset.pattern.permute.xlu0 0
  %64 = vperm.xlu0 %63, %v27
  %v65 = vpop.permute.xlu0 %64
  %68 = vset.pattern.permute.xlu0 0
  %69 = vperm.xlu0 %68, %v28
  %v70 = vpop.permute.xlu0 %69
  %73 = vset.pattern.permute.xlu0 0
  %74 = vperm.xlu0 %73, %v29
  %v75 = vpop.permute.xlu0 %74
  %78 = vset.pattern.permute.xlu0 0
  %79 = vperm.xlu0 %78, %v30
  %v80 = vpop.permute.xlu0 %79
  %83 = vset.pattern.permute.xlu0 0
  %84 = vperm.xlu0 %83, %v31
  %v85 = vpop.permute.xlu0 %84
  %88 = vset.pattern.permute.xlu0 0
  %89 = vperm.xlu0 %88, %v32
  %v90 = vpop.permute.xlu0 %89
  %93 = vset.pattern.permute.xlu0 0
  %94 = vperm.xlu0 %93, %v33
  %v95 = vpop.permute.xlu0 %94
  %98 = vset.pattern.permute.xlu0 0
  %99 = vperm.xlu0 %98, %v34
  %v100 = vpop.permute.xlu0 %99
  %v103 = vlaneseq
  %v104 = vshrl.u32 %v103, 7
  %v105 = vsub.s32 0, %v104
  %v106 = vrot.slane %v35, %v105
  %v108 = vmul.f32 %v40, %v106
  %v109 = vmul.f32 %v45, %v106
  %v110 = vmul.f32 %v50, %v106
  %v111 = vmul.f32 %v55, %v106
  %v112 = vmul.f32 %v60, %v106
  %v113 = vmul.f32 %v65, %v106
  %v114 = vmul.f32 %v70, %v106
  %v115 = vmul.f32 %v75, %v106
  %v116 = vmul.f32 %v80, %v106
  %v117 = vmul.f32 %v85, %v106
  %v118 = vmul.f32 %v90, %v106
  %v119 = vmul.f32 %v95, %v106
  %v120 = vmul.f32 %v100, %v106
  %v122 = vlaneseq
  %v123 = vshrl.u32 %v122, 7
  %v124 = vsub.s32 0, %v123
  %v125 = vrot.slane %v36, %v124
  %v127 = vadd.f32 %v125, %v108
  %v128 = vadd.f32 %v125, %v109
  %v129 = vadd.f32 %v125, %v110
  %v130 = vadd.f32 %v125, %v111
  %v131 = vadd.f32 %v125, %v112
  %v132 = vadd.f32 %v125, %v113
  %v133 = vadd.f32 %v125, %v114
  %v134 = vadd.f32 %v125, %v115
  %v135 = vadd.f32 %v125, %v116
  %v136 = vadd.f32 %v125, %v117
  %v137 = vadd.f32 %v125, %v118
  %v138 = vadd.f32 %v125, %v119
  %v139 = vadd.f32 %v125, %v120
  %v140 = vmax.f32 %v127, 0.0
  %v141 = vmax.f32 %v128, 0.0
  %v142 = vmax.f32 %v129, 0.0
  %v143 = vmax.f32 %v130, 0.0
  %v144 = vmax.f32 %v131, 0.0
  %v145 = vmax.f32 %v132, 0.0
  %v146 = vmax.f32 %v133, 0.0
  %v147 = vmax.f32 %v134, 0.0
  %v148 = vmax.f32 %v135, 0.0
  %v149 = vmax.f32 %v136, 0.0
  %v150 = vmax.f32 %v137, 0.0
  %v151 = vmax.f32 %v138, 0.0
  %v152 = vmax.f32 %v139, 0.0
  %v153 = vld [vmem:[%s3] sm:$0x1]
  %v154 = vld [vmem:[#allocation2] sm:$0x1]
  %v156 = vlaneseq
  %v157 = vshrl.u32 %v156, 7
  %v158 = vsub.s32 0, %v157
  %v159 = vrot.slane %v153, %v158
  %v161 = vmul.f32 %v140, %v159
  %v162 = vmul.f32 %v141, %v159
  %v163 = vmul.f32 %v142, %v159
  %v164 = vmul.f32 %v143, %v159
  %v165 = vmul.f32 %v144, %v159
  %v166 = vmul.f32 %v145, %v159
  %v167 = vmul.f32 %v146, %v159
  %v168 = vmul.f32 %v147, %v159
  %v169 = vmul.f32 %v148, %v159
  %v170 = vmul.f32 %v149, %v159
  %v171 = vmul.f32 %v150, %v159
  %v172 = vmul.f32 %v151, %v159
  %v173 = vmul.f32 %v152, %v159
  %174 = vadd.xlane.f32.xlu0 %v161
  %v175 = vpop.xlane.xlu0 %174
  %176 = vadd.xlane.f32.xlu0 %v162
  %v177 = vpop.xlane.xlu0 %176
  %178 = vadd.xlane.f32.xlu0 %v163
  %v179 = vpop.xlane.xlu0 %178
  %180 = vadd.xlane.f32.xlu0 %v164
  %v181 = vpop.xlane.xlu0 %180
  %182 = vadd.xlane.f32.xlu0 %v165
  %v183 = vpop.xlane.xlu0 %182
  %184 = vadd.xlane.f32.xlu0 %v166
  %v185 = vpop.xlane.xlu0 %184
  %186 = vadd.xlane.f32.xlu0 %v167
  %v187 = vpop.xlane.xlu0 %186
  %188 = vadd.xlane.f32.xlu0 %v168
  %v189 = vpop.xlane.xlu0 %188
  %190 = vadd.xlane.f32.xlu0 %v169
  %v191 = vpop.xlane.xlu0 %190
  %192 = vadd.xlane.f32.xlu0 %v170
  %v193 = vpop.xlane.xlu0 %192
  %194 = vadd.xlane.f32.xlu0 %v171
  %v195 = vpop.xlane.xlu0 %194
  %196 = vadd.xlane.f32.xlu0 %v172
  %v197 = vpop.xlane.xlu0 %196
  %198 = vadd.xlane.f32.xlu0 %v173
  %v199 = vpop.xlane.xlu0 %198
  %v201 = vlaneseq
  %v202 = vshrl.u32 %v201, 7
  %v203 = vsub.s32 0, %v202
  %v204 = vrot.slane %v154, %v203
  %v206 = vadd.f32 %v175, %v204
  %v207 = vadd.f32 %v177, %v204
  %v208 = vadd.f32 %v179, %v204
  %v209 = vadd.f32 %v181, %v204
  %v210 = vadd.f32 %v183, %v204
  %v211 = vadd.f32 %v185, %v204
  %v212 = vadd.f32 %v187, %v204
  %v213 = vadd.f32 %v189, %v204
  %v214 = vadd.f32 %v191, %v204
  %v215 = vadd.f32 %v193, %v204
  %v216 = vadd.f32 %v195, %v204
  %v217 = vadd.f32 %v197, %v204
  %v218 = vadd.f32 %v199, %v204
  %vm219 = vcmask 7168
  %220 = vst.msk [vmem:[%s5] sm:$0xff] %vm219, %v206
  %221 = vst.msk [vmem:[%s5 + $0x8] sm:$0xff] %vm219, %v207
  %222 = vst.msk [vmem:[%s5 + $0x10] sm:$0xff] %vm219, %v208
  %223 = vst.msk [vmem:[%s5 + $0x18] sm:$0xff] %vm219, %v209
  %224 = vst.msk [vmem:[%s5 + $0x20] sm:$0xff] %vm219, %v210
  %225 = vst.msk [vmem:[%s5 + $0x28] sm:$0xff] %vm219, %v211
  %226 = vst.msk [vmem:[%s5 + $0x30] sm:$0xff] %vm219, %v212
  %227 = vst.msk [vmem:[%s5 + $0x38] sm:$0xff] %vm219, %v213
  %228 = vst.msk [vmem:[%s5 + $0x40] sm:$0xff] %vm219, %v214
  %229 = vst.msk [vmem:[%s5 + $0x48] sm:$0xff] %vm219, %v215
  %230 = vst.msk [vmem:[%s5 + $0x50] sm:$0xff] %vm219, %v216
  %231 = vst.msk [vmem:[%s5 + $0x58] sm:$0xff] %vm219, %v217
  %232 = vst.msk [vmem:[%s5 + $0x60] sm:$0xff] %vm219, %v218
  // Predicated region
  $region22: #{_forward_vpu.1} parent=0 // pred_check
    _
  $region23: #{_forward_vpu.1} parent=0 // pred_check_branch
    %234 = sbr.rel (0) target = $region25
  $region24: #{_forward_vpu.1} parent=0 // pred_region
    _
  $region25: #{_forward_vpu.1} parent=0 // pred_fallthru
    _
  // Predicated region
  $region26: #{_forward_vpu.1} parent=0 // pred_check
    _
  $region27: #{_forward_vpu.1} parent=0 // pred_check_branch
    %236 = sbr.rel (0) target = $region29
  $region28: #{_forward_vpu.1} parent=0 // pred_region
    _
  $region29: #{_forward_vpu.1} parent=0 // pred_fallthru
    _

</llo_original>
